<compile_context>
chip_gen: v7x
topology: tpu7x:2x2x1
jax: 0.10.0
libtpu: 0.0.40
codegen_flags: <defaults>
</compile_context>

<pallas_src>
import functools

import jax
import jax.numpy as jnp
from jax import lax
from jax.experimental import pallas as pl
from jax.experimental.pallas import tpu as pltpu

_LANE = 128
_MIN_TILE_PX = 8 * _LANE  # one (8,128) vreg worth of pixels per channel plane


def _round_up(a, b):
    return ((a + b - 1) // b) * b


def _chain_kernel(x_ref, w_ref, b_ref, o_ref):
    # x_ref / o_ref: (1, 3, TS, 128) VMEM blocks (batch, channel, sublanes, lanes)
    # w_ref: (81,) f32 in SMEM  -> w[l*9 + out_c*3 + in_c]
    # b_ref: (27,) f32 in SMEM  -> b[l*3 + out_c]
    ts = x_ref.shape[2]

    # Sub-chunk of sublane rows per inner iteration: <=32 rows = 4 f32 vregs
    # per channel plane, so ~6 live planes + temps fit comfortably in 64 vregs.
    sub = 32
    while ts % sub:
        sub //= 2
    nchunk = ts // sub

    def layer(l, a0, a1, a2):
        wb = l * 9
        bb = l * 3
        y0 = w_ref[wb + 0] * a0 + w_ref[wb + 1] * a1 + w_ref[wb + 2] * a2 + b_ref[bb + 0]
        y1 = w_ref[wb + 3] * a0 + w_ref[wb + 4] * a1 + w_ref[wb + 5] * a2 + b_ref[bb + 1]
        y2 = w_ref[wb + 6] * a0 + w_ref[wb + 7] * a1 + w_ref[wb + 8] * a2 + b_ref[bb + 2]
        return y0, y1, y2

    def clip3(v, lo, hi):
        return tuple(jnp.clip(a, lo, hi) for a in v)

    def relu3(v):
        return tuple(jnp.maximum(a, 0.0) for a in v)

    def body(ci, carry):
        s = pl.multiple_of(ci * sub, sub)
        x0 = x_ref[0, 0, pl.ds(s, sub), :]
        x1 = x_ref[0, 1, pl.ds(s, sub), :]
        x2 = x_ref[0, 2, pl.ds(s, sub), :]

        v = layer(0, x0, x1, x2)
        v = clip3(v, 0.0, 6.0)               # conv1 -> hardtanh(0, 6)
        v = relu3(layer(1, *v))              # conv2 -> relu
        v = clip3(layer(2, *v), -2.0, 6.0)   # conv3 -> hardtanh(-2, 6)
        v = relu3(layer(3, *v))              # conv4 -> relu
        v = clip3(layer(4, *v), 0.0, 6.0)    # conv5 -> hardtanh(0, 6)
        v = relu3(layer(5, *v))              # conv6 -> relu
        v = clip3(layer(6, *v), 0.0, 4.0)    # conv7 -> hardtanh(0, 4)
        v = layer(7, *v)                     # conv8 (no activation)
        v = relu3(layer(8, *v))              # conv9 -> relu

        o_ref[0, 0, pl.ds(s, sub), :] = v[0].astype(o_ref.dtype)
        o_ref[0, 1, pl.ds(s, sub), :] = v[1].astype(o_ref.dtype)
        o_ref[0, 2, pl.ds(s, sub), :] = v[2].astype(o_ref.dtype)
        return carry

    lax.fori_loop(0, nchunk, body, 0)


@functools.partial(jax.jit, static_argnames=("max_tile_px",))
def hardtanh_bound_to_pot_net(x_nchw, weights, biases, *, max_tile_px=131072):
    """Forward pass matching HardtanhBoundToPOTNet.

    x_nchw:  (N, 3, H, W) float32
    weights: (9, 3, 3) float32, weights[i] = conv_i weight as (out_c, in_c)
    biases:  (9, 3) float32
    """
    n, c, h, w = x_nchw.shape
    assert c == 3, "module is fixed to 3 channels"
    hw = h * w

    # Pixel tile per grid step: large (DMA-efficient, amortizes per-step
    # overhead), lane-dense, and a multiple of 8*128 so blocks are full
    # (8,128) tiles.  VMEM budget: 4 double-buffered blocks of
    # 3*ts*128*4 bytes — well under the 32 MiB scoped limit everywhere.
    tile_px = min(_round_up(max_tile_px, _MIN_TILE_PX),
                  _round_up(hw, _MIN_TILE_PX))
    hw_pad = _round_up(hw, tile_px)
    ts = tile_px // _LANE
    s_total = hw_pad // _LANE
    num_tiles = hw_pad // tile_px

    # NCHW kept as-is: just fold H*W and split into lane-dense rows.
    x3 = x_nchw.reshape(n, c, hw)
    if hw_pad != hw:
        x3 = jnp.pad(x3, ((0, 0), (0, 0), (0, hw_pad - hw)))
    x4 = x3.reshape(n, c, s_total, _LANE)

    w_flat = weights.astype(jnp.float32).reshape(-1)  # (81,)
    b_flat = biases.astype(jnp.float32).reshape(-1)   # (27,)

    out4 = pl.pallas_call(
        _chain_kernel,
        out_shape=jax.ShapeDtypeStruct((n, c, s_total, _LANE), x_nchw.dtype),
        grid=(n, num_tiles),
        in_specs=[
            pl.BlockSpec((1, c, ts, _LANE), lambda nb, tb: (nb, 0, tb, 0)),
            pl.BlockSpec(memory_space=pltpu.MemorySpace.SMEM),
            pl.BlockSpec(memory_space=pltpu.MemorySpace.SMEM),
        ],
        out_specs=pl.BlockSpec((1, c, ts, _LANE), lambda nb, tb: (nb, 0, tb, 0)),
        compiler_params=pltpu.CompilerParams(
            dimension_semantics=("parallel", "parallel"),
            vmem_limit_bytes=32 * 1024 * 1024,
        ),
    )(x4, w_flat, b_flat)

    out3 = out4.reshape(n, c, hw_pad)
    if hw_pad != hw:
        out3 = out3[:, :, :hw]
    return out3.reshape(n, c, h, w)


def _reference_forward(x_nchw, weights, biases):
    """Pure-JAX reference (same math, no Pallas)."""
    def conv(i, v):
        return (jnp.einsum("nchw,oc->nohw", v, weights[i])
                + biases[i][None, :, None, None])

    x = jnp.clip(conv(0, x_nchw), 0.0, 6.0)
    x = jnp.maximum(conv(1, x), 0.0)
    x = jnp.clip(conv(2, x), -2.0, 6.0)
    x = jnp.maximum(conv(3, x), 0.0)
    x = jnp.clip(conv(4, x), 0.0, 6.0)
    x = jnp.maximum(conv(5, x), 0.0)
    x = jnp.clip(conv(6, x), 0.0, 4.0)
    x = conv(7, x)
    x = jnp.maximum(conv(8, x), 0.0)
    return x


if __name__ == "__main__":
    key = jax.random.PRNGKey(0)
    k_x, k_w, k_b = jax.random.split(key, 3)

    # Input: NCHW, batch=2, channels=3 (fixed by the module), spatial=16.
    N, C, H, W = 2, 3, 16, 16
    x = jax.random.normal(k_x, (N, C, H, W), dtype=jnp.float32)

    # Deterministic parameter init mimicking PyTorch Conv2d default:
    # uniform(-1/sqrt(fan_in), 1/sqrt(fan_in)), fan_in = in_c * 1 * 1 = 3.
    bound = 1.0 / jnp.sqrt(3.0)
    weights = jax.random.uniform(k_w, (9, C, C), jnp.float32, -bound, bound)
    biases = jax.random.uniform(k_b, (9, C), jnp.float32, -bound, bound)

    out = hardtanh_bound_to_pot_net(x, weights, biases)
    out = jax.block_until_ready(out)

    ref = _reference_forward(x, weights, biases)
    assert out.shape == (N, C, H, W)
    assert jnp.allclose(out, ref, atol=1e-5, rtol=1e-5), "mismatch vs reference"

    print("KERNEL_OK")
</pallas_src>

<mosaic_0001>
module attributes {stable_mosaic.version = 11 : i64} {
  func.func @_chain_kernel(%arg0: i32, %arg1: i32, %arg2: memref<1x3x8x128xf32, #tpu.memory_space<vmem>>, %arg3: memref<81xf32, #tpu.memory_space<smem>>, %arg4: memref<27xf32, #tpu.memory_space<smem>>, %arg5: memref<1x3x8x128xf32, #tpu.memory_space<vmem>>) attributes {dimension_semantics = [#tpu.dimension_semantics<parallel>, #tpu.dimension_semantics<parallel>], iteration_bounds = array<i64: 2, 1>, scalar_prefetch = 0 : i64, scratch_operands = 0 : i64, tpu.core_type = #tpu.core_type<tc>, window_params = [{transform_indices = @transform_0, window_bounds = array<i64: 1, 3, 8, 128>}, {transform_indices = @transform_1, window_bounds = array<i64: 81>}, {transform_indices = @transform_2, window_bounds = array<i64: 27>}, {transform_indices = @transform_3, window_bounds = array<i64: 1, 3, 8, 128>}]} {
    %c0_i32 = arith.constant 0 : i32
    %c8_i32 = arith.constant 8 : i32
    %0 = arith.muli %c0_i32, %c8_i32 : i32
    %1 = tpu.assume_multiple %0, 8 : i32
    %c0 = arith.constant 0 : index
    %c0_0 = arith.constant 0 : index
    %2 = arith.index_cast %1 : i32 to index
    %c0_1 = arith.constant 0 : index
    %3 = vector.load %arg2[%c0, %c0_0, %2, %c0_1] : memref<1x3x8x128xf32, #tpu.memory_space<vmem>>, vector<1x1x8x128xf32>
    %4 = vector.shape_cast %3 : vector<1x1x8x128xf32> to vector<8x128xf32>
    %c0_2 = arith.constant 0 : index
    %c1 = arith.constant 1 : index
    %5 = arith.index_cast %1 : i32 to index
    %c0_3 = arith.constant 0 : index
    %6 = vector.load %arg2[%c0_2, %c1, %5, %c0_3] : memref<1x3x8x128xf32, #tpu.memory_space<vmem>>, vector<1x1x8x128xf32>
    %7 = vector.shape_cast %6 : vector<1x1x8x128xf32> to vector<8x128xf32>
    %c0_4 = arith.constant 0 : index
    %c2 = arith.constant 2 : index
    %8 = arith.index_cast %1 : i32 to index
    %c0_5 = arith.constant 0 : index
    %9 = vector.load %arg2[%c0_4, %c2, %8, %c0_5] : memref<1x3x8x128xf32, #tpu.memory_space<vmem>>, vector<1x1x8x128xf32>
    %10 = vector.shape_cast %9 : vector<1x1x8x128xf32> to vector<8x128xf32>
    %c0_6 = arith.constant 0 : index
    %11 = memref.load %arg3[%c0_6] : memref<81xf32, #tpu.memory_space<smem>>
    %12 = vector.broadcast %11 : f32 to vector<8x128xf32>
    %13 = arith.mulf %12, %4 : vector<8x128xf32>
    %c1_7 = arith.constant 1 : index
    %14 = memref.load %arg3[%c1_7] : memref<81xf32, #tpu.memory_space<smem>>
    %15 = vector.broadcast %14 : f32 to vector<8x128xf32>
    %16 = arith.mulf %15, %7 : vector<8x128xf32>
    %17 = arith.addf %13, %16 : vector<8x128xf32>
    %c2_8 = arith.constant 2 : index
    %18 = memref.load %arg3[%c2_8] : memref<81xf32, #tpu.memory_space<smem>>
    %19 = vector.broadcast %18 : f32 to vector<8x128xf32>
    %20 = arith.mulf %19, %10 : vector<8x128xf32>
    %21 = arith.addf %17, %20 : vector<8x128xf32>
    %c0_9 = arith.constant 0 : index
    %22 = memref.load %arg4[%c0_9] : memref<27xf32, #tpu.memory_space<smem>>
    %23 = vector.broadcast %22 : f32 to vector<8x128xf32>
    %24 = arith.addf %21, %23 : vector<8x128xf32>
    %c3 = arith.constant 3 : index
    %25 = memref.load %arg3[%c3] : memref<81xf32, #tpu.memory_space<smem>>
    %26 = vector.broadcast %25 : f32 to vector<8x128xf32>
    %27 = arith.mulf %26, %4 : vector<8x128xf32>
    %c4 = arith.constant 4 : index
    %28 = memref.load %arg3[%c4] : memref<81xf32, #tpu.memory_space<smem>>
    %29 = vector.broadcast %28 : f32 to vector<8x128xf32>
    %30 = arith.mulf %29, %7 : vector<8x128xf32>
    %31 = arith.addf %27, %30 : vector<8x128xf32>
    %c5 = arith.constant 5 : index
    %32 = memref.load %arg3[%c5] : memref<81xf32, #tpu.memory_space<smem>>
    %33 = vector.broadcast %32 : f32 to vector<8x128xf32>
    %34 = arith.mulf %33, %10 : vector<8x128xf32>
    %35 = arith.addf %31, %34 : vector<8x128xf32>
    %c1_10 = arith.constant 1 : index
    %36 = memref.load %arg4[%c1_10] : memref<27xf32, #tpu.memory_space<smem>>
    %37 = vector.broadcast %36 : f32 to vector<8x128xf32>
    %38 = arith.addf %35, %37 : vector<8x128xf32>
    %c6 = arith.constant 6 : index
    %39 = memref.load %arg3[%c6] : memref<81xf32, #tpu.memory_space<smem>>
    %40 = vector.broadcast %39 : f32 to vector<8x128xf32>
    %41 = arith.mulf %40, %4 : vector<8x128xf32>
    %c7 = arith.constant 7 : index
    %42 = memref.load %arg3[%c7] : memref<81xf32, #tpu.memory_space<smem>>
    %43 = vector.broadcast %42 : f32 to vector<8x128xf32>
    %44 = arith.mulf %43, %7 : vector<8x128xf32>
    %45 = arith.addf %41, %44 : vector<8x128xf32>
    %c8 = arith.constant 8 : index
    %46 = memref.load %arg3[%c8] : memref<81xf32, #tpu.memory_space<smem>>
    %47 = vector.broadcast %46 : f32 to vector<8x128xf32>
    %48 = arith.mulf %47, %10 : vector<8x128xf32>
    %49 = arith.addf %45, %48 : vector<8x128xf32>
    %c2_11 = arith.constant 2 : index
    %50 = memref.load %arg4[%c2_11] : memref<27xf32, #tpu.memory_space<smem>>
    %51 = vector.broadcast %50 : f32 to vector<8x128xf32>
    %52 = arith.addf %49, %51 : vector<8x128xf32>
    %cst = arith.constant 0.000000e+00 : f32
    %cst_12 = arith.constant 6.000000e+00 : f32
    %53 = vector.broadcast %cst : f32 to vector<8x128xf32>
    %54 = arith.maximumf %53, %24 : vector<8x128xf32>
    %55 = vector.broadcast %cst_12 : f32 to vector<8x128xf32>
    %56 = arith.minimumf %55, %54 : vector<8x128xf32>
    %cst_13 = arith.constant 0.000000e+00 : f32
    %cst_14 = arith.constant 6.000000e+00 : f32
    %57 = vector.broadcast %cst_13 : f32 to vector<8x128xf32>
    %58 = arith.maximumf %57, %38 : vector<8x128xf32>
    %59 = vector.broadcast %cst_14 : f32 to vector<8x128xf32>
    %60 = arith.minimumf %59, %58 : vector<8x128xf32>
    %cst_15 = arith.constant 0.000000e+00 : f32
    %cst_16 = arith.constant 6.000000e+00 : f32
    %61 = vector.broadcast %cst_15 : f32 to vector<8x128xf32>
    %62 = arith.maximumf %61, %52 : vector<8x128xf32>
    %63 = vector.broadcast %cst_16 : f32 to vector<8x128xf32>
    %64 = arith.minimumf %63, %62 : vector<8x128xf32>
    %c9 = arith.constant 9 : index
    %65 = memref.load %arg3[%c9] : memref<81xf32, #tpu.memory_space<smem>>
    %66 = vector.broadcast %65 : f32 to vector<8x128xf32>
    %67 = arith.mulf %66, %56 : vector<8x128xf32>
    %c10 = arith.constant 10 : index
    %68 = memref.load %arg3[%c10] : memref<81xf32, #tpu.memory_space<smem>>
    %69 = vector.broadcast %68 : f32 to vector<8x128xf32>
    %70 = arith.mulf %69, %60 : vector<8x128xf32>
    %71 = arith.addf %67, %70 : vector<8x128xf32>
    %c11 = arith.constant 11 : index
    %72 = memref.load %arg3[%c11] : memref<81xf32, #tpu.memory_space<smem>>
    %73 = vector.broadcast %72 : f32 to vector<8x128xf32>
    %74 = arith.mulf %73, %64 : vector<8x128xf32>
    %75 = arith.addf %71, %74 : vector<8x128xf32>
    %c3_17 = arith.constant 3 : index
    %76 = memref.load %arg4[%c3_17] : memref<27xf32, #tpu.memory_space<smem>>
    %77 = vector.broadcast %76 : f32 to vector<8x128xf32>
    %78 = arith.addf %75, %77 : vector<8x128xf32>
    %c12 = arith.constant 12 : index
    %79 = memref.load %arg3[%c12] : memref<81xf32, #tpu.memory_space<smem>>
    %80 = vector.broadcast %79 : f32 to vector<8x128xf32>
    %81 = arith.mulf %80, %56 : vector<8x128xf32>
    %c13 = arith.constant 13 : index
    %82 = memref.load %arg3[%c13] : memref<81xf32, #tpu.memory_space<smem>>
    %83 = vector.broadcast %82 : f32 to vector<8x128xf32>
    %84 = arith.mulf %83, %60 : vector<8x128xf32>
    %85 = arith.addf %81, %84 : vector<8x128xf32>
    %c14 = arith.constant 14 : index
    %86 = memref.load %arg3[%c14] : memref<81xf32, #tpu.memory_space<smem>>
    %87 = vector.broadcast %86 : f32 to vector<8x128xf32>
    %88 = arith.mulf %87, %64 : vector<8x128xf32>
    %89 = arith.addf %85, %88 : vector<8x128xf32>
    %c4_18 = arith.constant 4 : index
    %90 = memref.load %arg4[%c4_18] : memref<27xf32, #tpu.memory_space<smem>>
    %91 = vector.broadcast %90 : f32 to vector<8x128xf32>
    %92 = arith.addf %89, %91 : vector<8x128xf32>
    %c15 = arith.constant 15 : index
    %93 = memref.load %arg3[%c15] : memref<81xf32, #tpu.memory_space<smem>>
    %94 = vector.broadcast %93 : f32 to vector<8x128xf32>
    %95 = arith.mulf %94, %56 : vector<8x128xf32>
    %c16 = arith.constant 16 : index
    %96 = memref.load %arg3[%c16] : memref<81xf32, #tpu.memory_space<smem>>
    %97 = vector.broadcast %96 : f32 to vector<8x128xf32>
    %98 = arith.mulf %97, %60 : vector<8x128xf32>
    %99 = arith.addf %95, %98 : vector<8x128xf32>
    %c17 = arith.constant 17 : index
    %100 = memref.load %arg3[%c17] : memref<81xf32, #tpu.memory_space<smem>>
    %101 = vector.broadcast %100 : f32 to vector<8x128xf32>
    %102 = arith.mulf %101, %64 : vector<8x128xf32>
    %103 = arith.addf %99, %102 : vector<8x128xf32>
    %c5_19 = arith.constant 5 : index
    %104 = memref.load %arg4[%c5_19] : memref<27xf32, #tpu.memory_space<smem>>
    %105 = vector.broadcast %104 : f32 to vector<8x128xf32>
    %106 = arith.addf %103, %105 : vector<8x128xf32>
    %cst_20 = arith.constant 0.000000e+00 : f32
    %107 = vector.broadcast %cst_20 : f32 to vector<8x128xf32>
    %108 = arith.maximumf %78, %107 : vector<8x128xf32>
    %cst_21 = arith.constant 0.000000e+00 : f32
    %109 = vector.broadcast %cst_21 : f32 to vector<8x128xf32>
    %110 = arith.maximumf %92, %109 : vector<8x128xf32>
    %cst_22 = arith.constant 0.000000e+00 : f32
    %111 = vector.broadcast %cst_22 : f32 to vector<8x128xf32>
    %112 = arith.maximumf %106, %111 : vector<8x128xf32>
    %c18 = arith.constant 18 : index
    %113 = memref.load %arg3[%c18] : memref<81xf32, #tpu.memory_space<smem>>
    %114 = vector.broadcast %113 : f32 to vector<8x128xf32>
    %115 = arith.mulf %114, %108 : vector<8x128xf32>
    %c19 = arith.constant 19 : index
    %116 = memref.load %arg3[%c19] : memref<81xf32, #tpu.memory_space<smem>>
    %117 = vector.broadcast %116 : f32 to vector<8x128xf32>
    %118 = arith.mulf %117, %110 : vector<8x128xf32>
    %119 = arith.addf %115, %118 : vector<8x128xf32>
    %c20 = arith.constant 20 : index
    %120 = memref.load %arg3[%c20] : memref<81xf32, #tpu.memory_space<smem>>
    %121 = vector.broadcast %120 : f32 to vector<8x128xf32>
    %122 = arith.mulf %121, %112 : vector<8x128xf32>
    %123 = arith.addf %119, %122 : vector<8x128xf32>
    %c6_23 = arith.constant 6 : index
    %124 = memref.load %arg4[%c6_23] : memref<27xf32, #tpu.memory_space<smem>>
    %125 = vector.broadcast %124 : f32 to vector<8x128xf32>
    %126 = arith.addf %123, %125 : vector<8x128xf32>
    %c21 = arith.constant 21 : index
    %127 = memref.load %arg3[%c21] : memref<81xf32, #tpu.memory_space<smem>>
    %128 = vector.broadcast %127 : f32 to vector<8x128xf32>
    %129 = arith.mulf %128, %108 : vector<8x128xf32>
    %c22 = arith.constant 22 : index
    %130 = memref.load %arg3[%c22] : memref<81xf32, #tpu.memory_space<smem>>
    %131 = vector.broadcast %130 : f32 to vector<8x128xf32>
    %132 = arith.mulf %131, %110 : vector<8x128xf32>
    %133 = arith.addf %129, %132 : vector<8x128xf32>
    %c23 = arith.constant 23 : index
    %134 = memref.load %arg3[%c23] : memref<81xf32, #tpu.memory_space<smem>>
    %135 = vector.broadcast %134 : f32 to vector<8x128xf32>
    %136 = arith.mulf %135, %112 : vector<8x128xf32>
    %137 = arith.addf %133, %136 : vector<8x128xf32>
    %c7_24 = arith.constant 7 : index
    %138 = memref.load %arg4[%c7_24] : memref<27xf32, #tpu.memory_space<smem>>
    %139 = vector.broadcast %138 : f32 to vector<8x128xf32>
    %140 = arith.addf %137, %139 : vector<8x128xf32>
    %c24 = arith.constant 24 : index
    %141 = memref.load %arg3[%c24] : memref<81xf32, #tpu.memory_space<smem>>
    %142 = vector.broadcast %141 : f32 to vector<8x128xf32>
    %143 = arith.mulf %142, %108 : vector<8x128xf32>
    %c25 = arith.constant 25 : index
    %144 = memref.load %arg3[%c25] : memref<81xf32, #tpu.memory_space<smem>>
    %145 = vector.broadcast %144 : f32 to vector<8x128xf32>
    %146 = arith.mulf %145, %110 : vector<8x128xf32>
    %147 = arith.addf %143, %146 : vector<8x128xf32>
    %c26 = arith.constant 26 : index
    %148 = memref.load %arg3[%c26] : memref<81xf32, #tpu.memory_space<smem>>
    %149 = vector.broadcast %148 : f32 to vector<8x128xf32>
    %150 = arith.mulf %149, %112 : vector<8x128xf32>
    %151 = arith.addf %147, %150 : vector<8x128xf32>
    %c8_25 = arith.constant 8 : index
    %152 = memref.load %arg4[%c8_25] : memref<27xf32, #tpu.memory_space<smem>>
    %153 = vector.broadcast %152 : f32 to vector<8x128xf32>
    %154 = arith.addf %151, %153 : vector<8x128xf32>
    %cst_26 = arith.constant -2.000000e+00 : f32
    %cst_27 = arith.constant 6.000000e+00 : f32
    %155 = vector.broadcast %cst_26 : f32 to vector<8x128xf32>
    %156 = arith.maximumf %155, %126 : vector<8x128xf32>
    %157 = vector.broadcast %cst_27 : f32 to vector<8x128xf32>
    %158 = arith.minimumf %157, %156 : vector<8x128xf32>
    %cst_28 = arith.constant -2.000000e+00 : f32
    %cst_29 = arith.constant 6.000000e+00 : f32
    %159 = vector.broadcast %cst_28 : f32 to vector<8x128xf32>
    %160 = arith.maximumf %159, %140 : vector<8x128xf32>
    %161 = vector.broadcast %cst_29 : f32 to vector<8x128xf32>
    %162 = arith.minimumf %161, %160 : vector<8x128xf32>
    %cst_30 = arith.constant -2.000000e+00 : f32
    %cst_31 = arith.constant 6.000000e+00 : f32
    %163 = vector.broadcast %cst_30 : f32 to vector<8x128xf32>
    %164 = arith.maximumf %163, %154 : vector<8x128xf32>
    %165 = vector.broadcast %cst_31 : f32 to vector<8x128xf32>
    %166 = arith.minimumf %165, %164 : vector<8x128xf32>
    %c27 = arith.constant 27 : index
    %167 = memref.load %arg3[%c27] : memref<81xf32, #tpu.memory_space<smem>>
    %168 = vector.broadcast %167 : f32 to vector<8x128xf32>
    %169 = arith.mulf %168, %158 : vector<8x128xf32>
    %c28 = arith.constant 28 : index
    %170 = memref.load %arg3[%c28] : memref<81xf32, #tpu.memory_space<smem>>
    %171 = vector.broadcast %170 : f32 to vector<8x128xf32>
    %172 = arith.mulf %171, %162 : vector<8x128xf32>
    %173 = arith.addf %169, %172 : vector<8x128xf32>
    %c29 = arith.constant 29 : index
    %174 = memref.load %arg3[%c29] : memref<81xf32, #tpu.memory_space<smem>>
    %175 = vector.broadcast %174 : f32 to vector<8x128xf32>
    %176 = arith.mulf %175, %166 : vector<8x128xf32>
    %177 = arith.addf %173, %176 : vector<8x128xf32>
    %c9_32 = arith.constant 9 : index
    %178 = memref.load %arg4[%c9_32] : memref<27xf32, #tpu.memory_space<smem>>
    %179 = vector.broadcast %178 : f32 to vector<8x128xf32>
    %180 = arith.addf %177, %179 : vector<8x128xf32>
    %c30 = arith.constant 30 : index
    %181 = memref.load %arg3[%c30] : memref<81xf32, #tpu.memory_space<smem>>
    %182 = vector.broadcast %181 : f32 to vector<8x128xf32>
    %183 = arith.mulf %182, %158 : vector<8x128xf32>
    %c31 = arith.constant 31 : index
    %184 = memref.load %arg3[%c31] : memref<81xf32, #tpu.memory_space<smem>>
    %185 = vector.broadcast %184 : f32 to vector<8x128xf32>
    %186 = arith.mulf %185, %162 : vector<8x128xf32>
    %187 = arith.addf %183, %186 : vector<8x128xf32>
    %c32 = arith.constant 32 : index
    %188 = memref.load %arg3[%c32] : memref<81xf32, #tpu.memory_space<smem>>
    %189 = vector.broadcast %188 : f32 to vector<8x128xf32>
    %190 = arith.mulf %189, %166 : vector<8x128xf32>
    %191 = arith.addf %187, %190 : vector<8x128xf32>
    %c10_33 = arith.constant 10 : index
    %192 = memref.load %arg4[%c10_33] : memref<27xf32, #tpu.memory_space<smem>>
    %193 = vector.broadcast %192 : f32 to vector<8x128xf32>
    %194 = arith.addf %191, %193 : vector<8x128xf32>
    %c33 = arith.constant 33 : index
    %195 = memref.load %arg3[%c33] : memref<81xf32, #tpu.memory_space<smem>>
    %196 = vector.broadcast %195 : f32 to vector<8x128xf32>
    %197 = arith.mulf %196, %158 : vector<8x128xf32>
    %c34 = arith.constant 34 : index
    %198 = memref.load %arg3[%c34] : memref<81xf32, #tpu.memory_space<smem>>
    %199 = vector.broadcast %198 : f32 to vector<8x128xf32>
    %200 = arith.mulf %199, %162 : vector<8x128xf32>
    %201 = arith.addf %197, %200 : vector<8x128xf32>
    %c35 = arith.constant 35 : index
    %202 = memref.load %arg3[%c35] : memref<81xf32, #tpu.memory_space<smem>>
    %203 = vector.broadcast %202 : f32 to vector<8x128xf32>
    %204 = arith.mulf %203, %166 : vector<8x128xf32>
    %205 = arith.addf %201, %204 : vector<8x128xf32>
    %c11_34 = arith.constant 11 : index
    %206 = memref.load %arg4[%c11_34] : memref<27xf32, #tpu.memory_space<smem>>
    %207 = vector.broadcast %206 : f32 to vector<8x128xf32>
    %208 = arith.addf %205, %207 : vector<8x128xf32>
    %cst_35 = arith.constant 0.000000e+00 : f32
    %209 = vector.broadcast %cst_35 : f32 to vector<8x128xf32>
    %210 = arith.maximumf %180, %209 : vector<8x128xf32>
    %cst_36 = arith.constant 0.000000e+00 : f32
    %211 = vector.broadcast %cst_36 : f32 to vector<8x128xf32>
    %212 = arith.maximumf %194, %211 : vector<8x128xf32>
    %cst_37 = arith.constant 0.000000e+00 : f32
    %213 = vector.broadcast %cst_37 : f32 to vector<8x128xf32>
    %214 = arith.maximumf %208, %213 : vector<8x128xf32>
    %c36 = arith.constant 36 : index
    %215 = memref.load %arg3[%c36] : memref<81xf32, #tpu.memory_space<smem>>
    %216 = vector.broadcast %215 : f32 to vector<8x128xf32>
    %217 = arith.mulf %216, %210 : vector<8x128xf32>
    %c37 = arith.constant 37 : index
    %218 = memref.load %arg3[%c37] : memref<81xf32, #tpu.memory_space<smem>>
    %219 = vector.broadcast %218 : f32 to vector<8x128xf32>
    %220 = arith.mulf %219, %212 : vector<8x128xf32>
    %221 = arith.addf %217, %220 : vector<8x128xf32>
    %c38 = arith.constant 38 : index
    %222 = memref.load %arg3[%c38] : memref<81xf32, #tpu.memory_space<smem>>
    %223 = vector.broadcast %222 : f32 to vector<8x128xf32>
    %224 = arith.mulf %223, %214 : vector<8x128xf32>
    %225 = arith.addf %221, %224 : vector<8x128xf32>
    %c12_38 = arith.constant 12 : index
    %226 = memref.load %arg4[%c12_38] : memref<27xf32, #tpu.memory_space<smem>>
    %227 = vector.broadcast %226 : f32 to vector<8x128xf32>
    %228 = arith.addf %225, %227 : vector<8x128xf32>
    %c39 = arith.constant 39 : index
    %229 = memref.load %arg3[%c39] : memref<81xf32, #tpu.memory_space<smem>>
    %230 = vector.broadcast %229 : f32 to vector<8x128xf32>
    %231 = arith.mulf %230, %210 : vector<8x128xf32>
    %c40 = arith.constant 40 : index
    %232 = memref.load %arg3[%c40] : memref<81xf32, #tpu.memory_space<smem>>
    %233 = vector.broadcast %232 : f32 to vector<8x128xf32>
    %234 = arith.mulf %233, %212 : vector<8x128xf32>
    %235 = arith.addf %231, %234 : vector<8x128xf32>
    %c41 = arith.constant 41 : index
    %236 = memref.load %arg3[%c41] : memref<81xf32, #tpu.memory_space<smem>>
    %237 = vector.broadcast %236 : f32 to vector<8x128xf32>
    %238 = arith.mulf %237, %214 : vector<8x128xf32>
    %239 = arith.addf %235, %238 : vector<8x128xf32>
    %c13_39 = arith.constant 13 : index
    %240 = memref.load %arg4[%c13_39] : memref<27xf32, #tpu.memory_space<smem>>
    %241 = vector.broadcast %240 : f32 to vector<8x128xf32>
    %242 = arith.addf %239, %241 : vector<8x128xf32>
    %c42 = arith.constant 42 : index
    %243 = memref.load %arg3[%c42] : memref<81xf32, #tpu.memory_space<smem>>
    %244 = vector.broadcast %243 : f32 to vector<8x128xf32>
    %245 = arith.mulf %244, %210 : vector<8x128xf32>
    %c43 = arith.constant 43 : index
    %246 = memref.load %arg3[%c43] : memref<81xf32, #tpu.memory_space<smem>>
    %247 = vector.broadcast %246 : f32 to vector<8x128xf32>
    %248 = arith.mulf %247, %212 : vector<8x128xf32>
    %249 = arith.addf %245, %248 : vector<8x128xf32>
    %c44 = arith.constant 44 : index
    %250 = memref.load %arg3[%c44] : memref<81xf32, #tpu.memory_space<smem>>
    %251 = vector.broadcast %250 : f32 to vector<8x128xf32>
    %252 = arith.mulf %251, %214 : vector<8x128xf32>
    %253 = arith.addf %249, %252 : vector<8x128xf32>
    %c14_40 = arith.constant 14 : index
    %254 = memref.load %arg4[%c14_40] : memref<27xf32, #tpu.memory_space<smem>>
    %255 = vector.broadcast %254 : f32 to vector<8x128xf32>
    %256 = arith.addf %253, %255 : vector<8x128xf32>
    %cst_41 = arith.constant 0.000000e+00 : f32
    %cst_42 = arith.constant 6.000000e+00 : f32
    %257 = vector.broadcast %cst_41 : f32 to vector<8x128xf32>
    %258 = arith.maximumf %257, %228 : vector<8x128xf32>
    %259 = vector.broadcast %cst_42 : f32 to vector<8x128xf32>
    %260 = arith.minimumf %259, %258 : vector<8x128xf32>
    %cst_43 = arith.constant 0.000000e+00 : f32
    %cst_44 = arith.constant 6.000000e+00 : f32
    %261 = vector.broadcast %cst_43 : f32 to vector<8x128xf32>
    %262 = arith.maximumf %261, %242 : vector<8x128xf32>
    %263 = vector.broadcast %cst_44 : f32 to vector<8x128xf32>
    %264 = arith.minimumf %263, %262 : vector<8x128xf32>
    %cst_45 = arith.constant 0.000000e+00 : f32
    %cst_46 = arith.constant 6.000000e+00 : f32
    %265 = vector.broadcast %cst_45 : f32 to vector<8x128xf32>
    %266 = arith.maximumf %265, %256 : vector<8x128xf32>
    %267 = vector.broadcast %cst_46 : f32 to vector<8x128xf32>
    %268 = arith.minimumf %267, %266 : vector<8x128xf32>
    %c45 = arith.constant 45 : index
    %269 = memref.load %arg3[%c45] : memref<81xf32, #tpu.memory_space<smem>>
    %270 = vector.broadcast %269 : f32 to vector<8x128xf32>
    %271 = arith.mulf %270, %260 : vector<8x128xf32>
    %c46 = arith.constant 46 : index
    %272 = memref.load %arg3[%c46] : memref<81xf32, #tpu.memory_space<smem>>
    %273 = vector.broadcast %272 : f32 to vector<8x128xf32>
    %274 = arith.mulf %273, %264 : vector<8x128xf32>
    %275 = arith.addf %271, %274 : vector<8x128xf32>
    %c47 = arith.constant 47 : index
    %276 = memref.load %arg3[%c47] : memref<81xf32, #tpu.memory_space<smem>>
    %277 = vector.broadcast %276 : f32 to vector<8x128xf32>
    %278 = arith.mulf %277, %268 : vector<8x128xf32>
    %279 = arith.addf %275, %278 : vector<8x128xf32>
    %c15_47 = arith.constant 15 : index
    %280 = memref.load %arg4[%c15_47] : memref<27xf32, #tpu.memory_space<smem>>
    %281 = vector.broadcast %280 : f32 to vector<8x128xf32>
    %282 = arith.addf %279, %281 : vector<8x128xf32>
    %c48 = arith.constant 48 : index
    %283 = memref.load %arg3[%c48] : memref<81xf32, #tpu.memory_space<smem>>
    %284 = vector.broadcast %283 : f32 to vector<8x128xf32>
    %285 = arith.mulf %284, %260 : vector<8x128xf32>
    %c49 = arith.constant 49 : index
    %286 = memref.load %arg3[%c49] : memref<81xf32, #tpu.memory_space<smem>>
    %287 = vector.broadcast %286 : f32 to vector<8x128xf32>
    %288 = arith.mulf %287, %264 : vector<8x128xf32>
    %289 = arith.addf %285, %288 : vector<8x128xf32>
    %c50 = arith.constant 50 : index
    %290 = memref.load %arg3[%c50] : memref<81xf32, #tpu.memory_space<smem>>
    %291 = vector.broadcast %290 : f32 to vector<8x128xf32>
    %292 = arith.mulf %291, %268 : vector<8x128xf32>
    %293 = arith.addf %289, %292 : vector<8x128xf32>
    %c16_48 = arith.constant 16 : index
    %294 = memref.load %arg4[%c16_48] : memref<27xf32, #tpu.memory_space<smem>>
    %295 = vector.broadcast %294 : f32 to vector<8x128xf32>
    %296 = arith.addf %293, %295 : vector<8x128xf32>
    %c51 = arith.constant 51 : index
    %297 = memref.load %arg3[%c51] : memref<81xf32, #tpu.memory_space<smem>>
    %298 = vector.broadcast %297 : f32 to vector<8x128xf32>
    %299 = arith.mulf %298, %260 : vector<8x128xf32>
    %c52 = arith.constant 52 : index
    %300 = memref.load %arg3[%c52] : memref<81xf32, #tpu.memory_space<smem>>
    %301 = vector.broadcast %300 : f32 to vector<8x128xf32>
    %302 = arith.mulf %301, %264 : vector<8x128xf32>
    %303 = arith.addf %299, %302 : vector<8x128xf32>
    %c53 = arith.constant 53 : index
    %304 = memref.load %arg3[%c53] : memref<81xf32, #tpu.memory_space<smem>>
    %305 = vector.broadcast %304 : f32 to vector<8x128xf32>
    %306 = arith.mulf %305, %268 : vector<8x128xf32>
    %307 = arith.addf %303, %306 : vector<8x128xf32>
    %c17_49 = arith.constant 17 : index
    %308 = memref.load %arg4[%c17_49] : memref<27xf32, #tpu.memory_space<smem>>
    %309 = vector.broadcast %308 : f32 to vector<8x128xf32>
    %310 = arith.addf %307, %309 : vector<8x128xf32>
    %cst_50 = arith.constant 0.000000e+00 : f32
    %311 = vector.broadcast %cst_50 : f32 to vector<8x128xf32>
    %312 = arith.maximumf %282, %311 : vector<8x128xf32>
    %cst_51 = arith.constant 0.000000e+00 : f32
    %313 = vector.broadcast %cst_51 : f32 to vector<8x128xf32>
    %314 = arith.maximumf %296, %313 : vector<8x128xf32>
    %cst_52 = arith.constant 0.000000e+00 : f32
    %315 = vector.broadcast %cst_52 : f32 to vector<8x128xf32>
    %316 = arith.maximumf %310, %315 : vector<8x128xf32>
    %c54 = arith.constant 54 : index
    %317 = memref.load %arg3[%c54] : memref<81xf32, #tpu.memory_space<smem>>
    %318 = vector.broadcast %317 : f32 to vector<8x128xf32>
    %319 = arith.mulf %318, %312 : vector<8x128xf32>
    %c55 = arith.constant 55 : index
    %320 = memref.load %arg3[%c55] : memref<81xf32, #tpu.memory_space<smem>>
    %321 = vector.broadcast %320 : f32 to vector<8x128xf32>
    %322 = arith.mulf %321, %314 : vector<8x128xf32>
    %323 = arith.addf %319, %322 : vector<8x128xf32>
    %c56 = arith.constant 56 : index
    %324 = memref.load %arg3[%c56] : memref<81xf32, #tpu.memory_space<smem>>
    %325 = vector.broadcast %324 : f32 to vector<8x128xf32>
    %326 = arith.mulf %325, %316 : vector<8x128xf32>
    %327 = arith.addf %323, %326 : vector<8x128xf32>
    %c18_53 = arith.constant 18 : index
    %328 = memref.load %arg4[%c18_53] : memref<27xf32, #tpu.memory_space<smem>>
    %329 = vector.broadcast %328 : f32 to vector<8x128xf32>
    %330 = arith.addf %327, %329 : vector<8x128xf32>
    %c57 = arith.constant 57 : index
    %331 = memref.load %arg3[%c57] : memref<81xf32, #tpu.memory_space<smem>>
    %332 = vector.broadcast %331 : f32 to vector<8x128xf32>
    %333 = arith.mulf %332, %312 : vector<8x128xf32>
    %c58 = arith.constant 58 : index
    %334 = memref.load %arg3[%c58] : memref<81xf32, #tpu.memory_space<smem>>
    %335 = vector.broadcast %334 : f32 to vector<8x128xf32>
    %336 = arith.mulf %335, %314 : vector<8x128xf32>
    %337 = arith.addf %333, %336 : vector<8x128xf32>
    %c59 = arith.constant 59 : index
    %338 = memref.load %arg3[%c59] : memref<81xf32, #tpu.memory_space<smem>>
    %339 = vector.broadcast %338 : f32 to vector<8x128xf32>
    %340 = arith.mulf %339, %316 : vector<8x128xf32>
    %341 = arith.addf %337, %340 : vector<8x128xf32>
    %c19_54 = arith.constant 19 : index
    %342 = memref.load %arg4[%c19_54] : memref<27xf32, #tpu.memory_space<smem>>
    %343 = vector.broadcast %342 : f32 to vector<8x128xf32>
    %344 = arith.addf %341, %343 : vector<8x128xf32>
    %c60 = arith.constant 60 : index
    %345 = memref.load %arg3[%c60] : memref<81xf32, #tpu.memory_space<smem>>
    %346 = vector.broadcast %345 : f32 to vector<8x128xf32>
    %347 = arith.mulf %346, %312 : vector<8x128xf32>
    %c61 = arith.constant 61 : index
    %348 = memref.load %arg3[%c61] : memref<81xf32, #tpu.memory_space<smem>>
    %349 = vector.broadcast %348 : f32 to vector<8x128xf32>
    %350 = arith.mulf %349, %314 : vector<8x128xf32>
    %351 = arith.addf %347, %350 : vector<8x128xf32>
    %c62 = arith.constant 62 : index
    %352 = memref.load %arg3[%c62] : memref<81xf32, #tpu.memory_space<smem>>
    %353 = vector.broadcast %352 : f32 to vector<8x128xf32>
    %354 = arith.mulf %353, %316 : vector<8x128xf32>
    %355 = arith.addf %351, %354 : vector<8x128xf32>
    %c20_55 = arith.constant 20 : index
    %356 = memref.load %arg4[%c20_55] : memref<27xf32, #tpu.memory_space<smem>>
    %357 = vector.broadcast %356 : f32 to vector<8x128xf32>
    %358 = arith.addf %355, %357 : vector<8x128xf32>
    %cst_56 = arith.constant 0.000000e+00 : f32
    %cst_57 = arith.constant 4.000000e+00 : f32
    %359 = vector.broadcast %cst_56 : f32 to vector<8x128xf32>
    %360 = arith.maximumf %359, %330 : vector<8x128xf32>
    %361 = vector.broadcast %cst_57 : f32 to vector<8x128xf32>
    %362 = arith.minimumf %361, %360 : vector<8x128xf32>
    %cst_58 = arith.constant 0.000000e+00 : f32
    %cst_59 = arith.constant 4.000000e+00 : f32
    %363 = vector.broadcast %cst_58 : f32 to vector<8x128xf32>
    %364 = arith.maximumf %363, %344 : vector<8x128xf32>
    %365 = vector.broadcast %cst_59 : f32 to vector<8x128xf32>
    %366 = arith.minimumf %365, %364 : vector<8x128xf32>
    %cst_60 = arith.constant 0.000000e+00 : f32
    %cst_61 = arith.constant 4.000000e+00 : f32
    %367 = vector.broadcast %cst_60 : f32 to vector<8x128xf32>
    %368 = arith.maximumf %367, %358 : vector<8x128xf32>
    %369 = vector.broadcast %cst_61 : f32 to vector<8x128xf32>
    %370 = arith.minimumf %369, %368 : vector<8x128xf32>
    %c63 = arith.constant 63 : index
    %371 = memref.load %arg3[%c63] : memref<81xf32, #tpu.memory_space<smem>>
    %372 = vector.broadcast %371 : f32 to vector<8x128xf32>
    %373 = arith.mulf %372, %362 : vector<8x128xf32>
    %c64 = arith.constant 64 : index
    %374 = memref.load %arg3[%c64] : memref<81xf32, #tpu.memory_space<smem>>
    %375 = vector.broadcast %374 : f32 to vector<8x128xf32>
    %376 = arith.mulf %375, %366 : vector<8x128xf32>
    %377 = arith.addf %373, %376 : vector<8x128xf32>
    %c65 = arith.constant 65 : index
    %378 = memref.load %arg3[%c65] : memref<81xf32, #tpu.memory_space<smem>>
    %379 = vector.broadcast %378 : f32 to vector<8x128xf32>
    %380 = arith.mulf %379, %370 : vector<8x128xf32>
    %381 = arith.addf %377, %380 : vector<8x128xf32>
    %c21_62 = arith.constant 21 : index
    %382 = memref.load %arg4[%c21_62] : memref<27xf32, #tpu.memory_space<smem>>
    %383 = vector.broadcast %382 : f32 to vector<8x128xf32>
    %384 = arith.addf %381, %383 : vector<8x128xf32>
    %c66 = arith.constant 66 : index
    %385 = memref.load %arg3[%c66] : memref<81xf32, #tpu.memory_space<smem>>
    %386 = vector.broadcast %385 : f32 to vector<8x128xf32>
    %387 = arith.mulf %386, %362 : vector<8x128xf32>
    %c67 = arith.constant 67 : index
    %388 = memref.load %arg3[%c67] : memref<81xf32, #tpu.memory_space<smem>>
    %389 = vector.broadcast %388 : f32 to vector<8x128xf32>
    %390 = arith.mulf %389, %366 : vector<8x128xf32>
    %391 = arith.addf %387, %390 : vector<8x128xf32>
    %c68 = arith.constant 68 : index
    %392 = memref.load %arg3[%c68] : memref<81xf32, #tpu.memory_space<smem>>
    %393 = vector.broadcast %392 : f32 to vector<8x128xf32>
    %394 = arith.mulf %393, %370 : vector<8x128xf32>
    %395 = arith.addf %391, %394 : vector<8x128xf32>
    %c22_63 = arith.constant 22 : index
    %396 = memref.load %arg4[%c22_63] : memref<27xf32, #tpu.memory_space<smem>>
    %397 = vector.broadcast %396 : f32 to vector<8x128xf32>
    %398 = arith.addf %395, %397 : vector<8x128xf32>
    %c69 = arith.constant 69 : index
    %399 = memref.load %arg3[%c69] : memref<81xf32, #tpu.memory_space<smem>>
    %400 = vector.broadcast %399 : f32 to vector<8x128xf32>
    %401 = arith.mulf %400, %362 : vector<8x128xf32>
    %c70 = arith.constant 70 : index
    %402 = memref.load %arg3[%c70] : memref<81xf32, #tpu.memory_space<smem>>
    %403 = vector.broadcast %402 : f32 to vector<8x128xf32>
    %404 = arith.mulf %403, %366 : vector<8x128xf32>
    %405 = arith.addf %401, %404 : vector<8x128xf32>
    %c71 = arith.constant 71 : index
    %406 = memref.load %arg3[%c71] : memref<81xf32, #tpu.memory_space<smem>>
    %407 = vector.broadcast %406 : f32 to vector<8x128xf32>
    %408 = arith.mulf %407, %370 : vector<8x128xf32>
    %409 = arith.addf %405, %408 : vector<8x128xf32>
    %c23_64 = arith.constant 23 : index
    %410 = memref.load %arg4[%c23_64] : memref<27xf32, #tpu.memory_space<smem>>
    %411 = vector.broadcast %410 : f32 to vector<8x128xf32>
    %412 = arith.addf %409, %411 : vector<8x128xf32>
    %c72 = arith.constant 72 : index
    %413 = memref.load %arg3[%c72] : memref<81xf32, #tpu.memory_space<smem>>
    %414 = vector.broadcast %413 : f32 to vector<8x128xf32>
    %415 = arith.mulf %414, %384 : vector<8x128xf32>
    %c73 = arith.constant 73 : index
    %416 = memref.load %arg3[%c73] : memref<81xf32, #tpu.memory_space<smem>>
    %417 = vector.broadcast %416 : f32 to vector<8x128xf32>
    %418 = arith.mulf %417, %398 : vector<8x128xf32>
    %419 = arith.addf %415, %418 : vector<8x128xf32>
    %c74 = arith.constant 74 : index
    %420 = memref.load %arg3[%c74] : memref<81xf32, #tpu.memory_space<smem>>
    %421 = vector.broadcast %420 : f32 to vector<8x128xf32>
    %422 = arith.mulf %421, %412 : vector<8x128xf32>
    %423 = arith.addf %419, %422 : vector<8x128xf32>
    %c24_65 = arith.constant 24 : index
    %424 = memref.load %arg4[%c24_65] : memref<27xf32, #tpu.memory_space<smem>>
    %425 = vector.broadcast %424 : f32 to vector<8x128xf32>
    %426 = arith.addf %423, %425 : vector<8x128xf32>
    %c75 = arith.constant 75 : index
    %427 = memref.load %arg3[%c75] : memref<81xf32, #tpu.memory_space<smem>>
    %428 = vector.broadcast %427 : f32 to vector<8x128xf32>
    %429 = arith.mulf %428, %384 : vector<8x128xf32>
    %c76 = arith.constant 76 : index
    %430 = memref.load %arg3[%c76] : memref<81xf32, #tpu.memory_space<smem>>
    %431 = vector.broadcast %430 : f32 to vector<8x128xf32>
    %432 = arith.mulf %431, %398 : vector<8x128xf32>
    %433 = arith.addf %429, %432 : vector<8x128xf32>
    %c77 = arith.constant 77 : index
    %434 = memref.load %arg3[%c77] : memref<81xf32, #tpu.memory_space<smem>>
    %435 = vector.broadcast %434 : f32 to vector<8x128xf32>
    %436 = arith.mulf %435, %412 : vector<8x128xf32>
    %437 = arith.addf %433, %436 : vector<8x128xf32>
    %c25_66 = arith.constant 25 : index
    %438 = memref.load %arg4[%c25_66] : memref<27xf32, #tpu.memory_space<smem>>
    %439 = vector.broadcast %438 : f32 to vector<8x128xf32>
    %440 = arith.addf %437, %439 : vector<8x128xf32>
    %c78 = arith.constant 78 : index
    %441 = memref.load %arg3[%c78] : memref<81xf32, #tpu.memory_space<smem>>
    %442 = vector.broadcast %441 : f32 to vector<8x128xf32>
    %443 = arith.mulf %442, %384 : vector<8x128xf32>
    %c79 = arith.constant 79 : index
    %444 = memref.load %arg3[%c79] : memref<81xf32, #tpu.memory_space<smem>>
    %445 = vector.broadcast %444 : f32 to vector<8x128xf32>
    %446 = arith.mulf %445, %398 : vector<8x128xf32>
    %447 = arith.addf %443, %446 : vector<8x128xf32>
    %c80 = arith.constant 80 : index
    %448 = memref.load %arg3[%c80] : memref<81xf32, #tpu.memory_space<smem>>
    %449 = vector.broadcast %448 : f32 to vector<8x128xf32>
    %450 = arith.mulf %449, %412 : vector<8x128xf32>
    %451 = arith.addf %447, %450 : vector<8x128xf32>
    %c26_67 = arith.constant 26 : index
    %452 = memref.load %arg4[%c26_67] : memref<27xf32, #tpu.memory_space<smem>>
    %453 = vector.broadcast %452 : f32 to vector<8x128xf32>
    %454 = arith.addf %451, %453 : vector<8x128xf32>
    %cst_68 = arith.constant 0.000000e+00 : f32
    %455 = vector.broadcast %cst_68 : f32 to vector<8x128xf32>
    %456 = arith.maximumf %426, %455 : vector<8x128xf32>
    %cst_69 = arith.constant 0.000000e+00 : f32
    %457 = vector.broadcast %cst_69 : f32 to vector<8x128xf32>
    %458 = arith.maximumf %440, %457 : vector<8x128xf32>
    %cst_70 = arith.constant 0.000000e+00 : f32
    %459 = vector.broadcast %cst_70 : f32 to vector<8x128xf32>
    %460 = arith.maximumf %454, %459 : vector<8x128xf32>
    %c0_71 = arith.constant 0 : index
    %c0_72 = arith.constant 0 : index
    %461 = arith.index_cast %1 : i32 to index
    %c0_73 = arith.constant 0 : index
    %462 = vector.load %arg5[%c0_71, %c0_72, %461, %c0_73] : memref<1x3x8x128xf32, #tpu.memory_space<vmem>>, vector<1x1x8x128xf32>
    %463 = vector.shape_cast %462 : vector<1x1x8x128xf32> to vector<8x128xf32>
    %464 = vector.shape_cast %456 : vector<8x128xf32> to vector<1x1x8x128xf32>
    tpu.vector_store %arg5[%c0_71, %c0_72, %461, %c0_73], %464 {strides = array<i32>} : memref<1x3x8x128xf32, #tpu.memory_space<vmem>>, vector<1x1x8x128xf32>,
    %c0_74 = arith.constant 0 : index
    %c1_75 = arith.constant 1 : index
    %465 = arith.index_cast %1 : i32 to index
    %c0_76 = arith.constant 0 : index
    %466 = vector.load %arg5[%c0_74, %c1_75, %465, %c0_76] : memref<1x3x8x128xf32, #tpu.memory_space<vmem>>, vector<1x1x8x128xf32>
    %467 = vector.shape_cast %466 : vector<1x1x8x128xf32> to vector<8x128xf32>
    %468 = vector.shape_cast %458 : vector<8x128xf32> to vector<1x1x8x128xf32>
    tpu.vector_store %arg5[%c0_74, %c1_75, %465, %c0_76], %468 {strides = array<i32>} : memref<1x3x8x128xf32, #tpu.memory_space<vmem>>, vector<1x1x8x128xf32>,
    %c0_77 = arith.constant 0 : index
    %c2_78 = arith.constant 2 : index
    %469 = arith.index_cast %1 : i32 to index
    %c0_79 = arith.constant 0 : index
    %470 = vector.load %arg5[%c0_77, %c2_78, %469, %c0_79] : memref<1x3x8x128xf32, #tpu.memory_space<vmem>>, vector<1x1x8x128xf32>
    %471 = vector.shape_cast %470 : vector<1x1x8x128xf32> to vector<8x128xf32>
    %472 = vector.shape_cast %460 : vector<8x128xf32> to vector<1x1x8x128xf32>
    tpu.vector_store %arg5[%c0_77, %c2_78, %469, %c0_79], %472 {strides = array<i32>} : memref<1x3x8x128xf32, #tpu.memory_space<vmem>>, vector<1x1x8x128xf32>,
    %c1_i32 = arith.constant 1 : i32
    return
  }
  func.func @transform_0(%arg0: i32, %arg1: i32) -> (i32, i32, i32, i32) {
    %c0_i32 = arith.constant 0 : i32
    %c0_i32_0 = arith.constant 0 : i32
    %c0_i32_1 = arith.constant 0 : i32
    return %arg0, %c0_i32, %arg1, %c0_i32_0 : i32, i32, i32, i32
  }
  func.func @transform_1(%arg0: i32, %arg1: i32) -> i32 {
    %c0_i32 = arith.constant 0 : i32
    %c0_i32_0 = arith.constant 0 : i32
    return %c0_i32 : i32
  }
  func.func @transform_2(%arg0: i32, %arg1: i32) -> i32 {
    %c0_i32 = arith.constant 0 : i32
    %c0_i32_0 = arith.constant 0 : i32
    return %c0_i32 : i32
  }
  func.func @transform_3(%arg0: i32, %arg1: i32) -> (i32, i32, i32, i32) {
    %c0_i32 = arith.constant 0 : i32
    %c0_i32_0 = arith.constant 0 : i32
    %c0_i32_1 = arith.constant 0 : i32
    return %arg0, %c0_i32, %arg1, %c0_i32_0 : i32, i32, i32, i32
  }
}

</mosaic_0001>

<llo_original>
// kernel: hardtanh_bound_to_pot_net.1
$region0: #{hardtanh_bound_to_pot_net.1}
  #allocation0 [shape = 'u32[]', space=smem, size = 0x4, offset = 0x4, fixed_abs, tag = 'smem constant byte address 0x4 - core index']
  #allocation1 [shape = 'u32[144,128]{1,0:T(1,128)}', space=vmem, size = 0x12000, scoped, tag = 'internal scratch']
  %s0 = inlined_call_operand.vmem [shape: f32[2,3,8,128], index: 0, kind: input, shape index: {}]
  %s1 = inlined_call_operand.vmem [shape: f32[81], index: 1, kind: input, shape index: {}]
  %s2 = inlined_call_operand.vmem [shape: f32[27], index: 2, kind: input, shape index: {}]
  %s3 = inlined_call_operand.vmem [shape: f32[2,3,8,128], index: 3, kind: output, shape index: {}]
  %s4 = sld [smem:[#allocation0]]
  $region53: #{hardtanh_bound_to_pot_net.1} parent=0
    _
  %s6 = ssub.s32 1, %s4
  %s7 = scalar_select 0, %s6, %s4
  $region1: #{hardtanh_bound_to_pot_net.1} parent=0
    #allocation2 [shape = 'u8[512]{0}', space=smem, size = 0x200, scoped, tag = 'input window, operand 1, single buffered']
    #allocation3 [shape = 's32[2]{0}', space=sflag, size = 0x8, scoped, tag = 'scoped memory for hardtanh_bound_to_pot_net.1']
    #allocation4 [shape = 'u8[512]{0}', space=smem, size = 0x200, scoped, tag = 'input window, operand 2, single buffered']
    #allocation5 [shape = 's32[1]{0}', space=sflag, size = 0x4, scoped, tag = 'scoped memory for hardtanh_bound_to_pot_net.1']
    %8 = vsyncpa [#allocation3], 0
    %9 = vsyncpa [#allocation5], 0
    loop: start=0, step=1, limit=4
    $region2: #{hardtanh_bound_to_pot_net.1} parent=1 // loop_pre_header
      _
    $region3: #{hardtanh_bound_to_pot_net.1} parent=1 // loop_header
      %s11 = sphi 0, %s15
      %p12 = scmp.ge.s32.totalorder %s11, 4
      %s18 = sphi 0, %s30
      %s19 = sphi 0, %s26
      %s20 = sphi 0, %s18
      %s21 = sphi 0, %s19
      %s22 = sphi 0, %s20
      %s23 = sphi 0, %s21
      %s35 = sphi 0, %s37
      %s38 = sphi 0, %s35
      %s39 = sphi 0, %s38
      %s55 = sphi 0, %s39
      %s59 = sphi 0, %s59
      %s61 = sphi 0, %s59
      %s62 = sphi 0, %s61
      %s76 = sphi 0, %s62
      %s80 = sphi 0, %s80
      %s82 = sphi 0, %s80
      %s83 = sphi 0, %s82
      %s97 = sphi 0, %s83
      %s105 = sphi 0, %s107
      %s108 = sphi 0, %s105
      %s109 = sphi 0, %s108
      %s125 = sphi 0, %s109
    $region4: #{hardtanh_bound_to_pot_net.1} parent=1 // loop_header_branch
      %14 = sbr.rel (%p12) target = $region8
    $region5: #{hardtanh_bound_to_pot_net.1} parent=1 // loop_body
      %s16 = ssub.s32 %s11, 1
      %s17 = ssub.s32 %s11, 2
      %s24 = sadd.s32 1, %s19
      %p25 = scmp.ge.s32.totalorder %s24, 1
      %s26 = scalar_select %p25, 0, %s24
      %s27 = sadd.s32 1, %s18
      %s28 = scalar_select %p25, %s27, %s18
      %p29 = scmp.ge.s32.totalorder %s28, 2
      %s30 = scalar_select %p29, 0, %s28
      %s31 = ssub.s32 %s18, %s30
      %s32 = ssub.s32 %s19, %s26
      %s33 = sor.u32 %s31, %s32
      %p34 = scmp.eq.s32.totalorder %s33, 0
      %s36 = sadd.s32 %s35, 1
      %s37 = scalar_select %p34, %s35, %s36
      %p40 = pneg %p34
      %p41 = scmp.eq.s32.totalorder %s11, 1
      %p42 = por %p40, %p41
      %p43 = scmp.ne.s32.totalorder %s35, %s38
      %p44 = scmp.eq.s32.totalorder %s11, 0
      %p45 = por %p43, %p44
      %p46 = scmp.ne.s32.totalorder %s35, %s38
      %p47 = scmp.eq.s32.totalorder %s16, 1
      %p48 = por %p46, %p47
      %p49 = scmp.ne.s32.totalorder %s38, %s39
      %p50 = scmp.eq.s32.totalorder %s16, 0
      %p51 = por %p49, %p50
      %p52 = scmp.ne.s32.totalorder %s38, %s39
      %p53 = scmp.eq.s32.totalorder %s17, 1
      %p54 = por %p52, %p53
      %p56 = scmp.ne.s32.totalorder %s39, %s55
      %p57 = scmp.eq.s32.totalorder %s17, 0
      %p58 = por %p56, %p57
      %s60 = sadd.s32 %s59, 1
      %p63 = scmp.eq.s32.totalorder %s11, 1
      %p64 = scmp.ne.s32.totalorder %s59, %s61
      %p65 = scmp.eq.s32.totalorder %s11, 0
      %p66 = por %p64, %p65
      %p67 = scmp.ne.s32.totalorder %s59, %s61
      %p68 = scmp.eq.s32.totalorder %s16, 1
      %p69 = por %p67, %p68
      %p70 = scmp.ne.s32.totalorder %s61, %s62
      %p71 = scmp.eq.s32.totalorder %s16, 0
      %p72 = por %p70, %p71
      %p73 = scmp.ne.s32.totalorder %s61, %s62
      %p74 = scmp.eq.s32.totalorder %s17, 1
      %p75 = por %p73, %p74
      %p77 = scmp.ne.s32.totalorder %s62, %s76
      %p78 = scmp.eq.s32.totalorder %s17, 0
      %p79 = por %p77, %p78
      %s81 = sadd.s32 %s80, 1
      %p84 = scmp.eq.s32.totalorder %s11, 1
      %p85 = scmp.ne.s32.totalorder %s80, %s82
      %p86 = scmp.eq.s32.totalorder %s11, 0
      %p87 = por %p85, %p86
      %p88 = scmp.ne.s32.totalorder %s80, %s82
      %p89 = scmp.eq.s32.totalorder %s16, 1
      %p90 = por %p88, %p89
      %p91 = scmp.ne.s32.totalorder %s82, %s83
      %p92 = scmp.eq.s32.totalorder %s16, 0
      %p93 = por %p91, %p92
      %p94 = scmp.ne.s32.totalorder %s82, %s83
      %p95 = scmp.eq.s32.totalorder %s17, 1
      %p96 = por %p94, %p95
      %p98 = scmp.ne.s32.totalorder %s83, %s97
      %p99 = scmp.eq.s32.totalorder %s17, 0
      %p100 = por %p98, %p99
      %s101 = ssub.s32 %s18, %s30
      %s102 = ssub.s32 %s19, %s26
      %s103 = sor.u32 %s101, %s102
      %p104 = scmp.eq.s32.totalorder %s103, 0
      %s106 = sadd.s32 %s105, 1
      %s107 = scalar_select %p104, %s105, %s106
      %p110 = pneg %p104
      %p111 = scmp.eq.s32.totalorder %s11, 1
      %p112 = por %p110, %p111
      %p113 = scmp.ne.s32.totalorder %s105, %s108
      %p114 = scmp.eq.s32.totalorder %s11, 0
      %p115 = por %p113, %p114
      %p116 = scmp.ne.s32.totalorder %s105, %s108
      %p117 = scmp.eq.s32.totalorder %s16, 1
      %p118 = por %p116, %p117
      %p119 = scmp.ne.s32.totalorder %s108, %s109
      %p120 = scmp.eq.s32.totalorder %s16, 0
      %p121 = por %p119, %p120
      %p122 = scmp.ne.s32.totalorder %s108, %s109
      %p123 = scmp.eq.s32.totalorder %s17, 1
      %p124 = por %p122, %p123
      %p126 = scmp.ne.s32.totalorder %s109, %s125
      %p127 = scmp.eq.s32.totalorder %s17, 0
      %p128 = por %p126, %p127
      %p129 = scmp.le.s32.totalorder 1, %s11
      %p130 = scmp.lt.s32.totalorder %s11, 3
      %p131 = pnand %p129, %p130
      %p132 = pneg %p131
      // Predicated region
      $region9: #{hardtanh_bound_to_pot_net.1} parent=5 // pred_check
        _
      $region10: #{hardtanh_bound_to_pot_net.1} parent=5 // pred_check_branch
        %134 = sbr.rel (%p131) target = $region12
      $region11: #{hardtanh_bound_to_pot_net.1} parent=5 // pred_region
        %s135 = ssub.s32 %s11, 1
        // Predicated region
        $region13: #{hardtanh_bound_to_pot_net.1} parent=11 // pred_check
          %p136 = pneg %p72
        $region14: #{hardtanh_bound_to_pot_net.1} parent=11 // pred_check_branch
          %138 = sbr.rel (%p136) target = $region16
        $region15: #{hardtanh_bound_to_pot_net.1} parent=11 // pred_region
          %s140 = ssub.s32 16, 16
          %141 = vsyncadd [#allocation3], %s140
          %s143 = sshll.u32 %s1, 4
          %s144 = int_to_ptr.vmem [resolvable:$true] %s143
          %146 = dma.vmem_to_smem %s144, 16, [#allocation2], [#allocation3]
        $region16: #{hardtanh_bound_to_pot_net.1} parent=11 // pred_fallthru
          _
        // Predicated region
        $region17: #{hardtanh_bound_to_pot_net.1} parent=11 // pred_check
          %p147 = pneg %p93
        $region18: #{hardtanh_bound_to_pot_net.1} parent=11 // pred_check_branch
          %149 = sbr.rel (%p147) target = $region20
        $region19: #{hardtanh_bound_to_pot_net.1} parent=11 // pred_region
          %s151 = ssub.s32 16, 16
          %152 = vsyncadd [#allocation5], %s151
          %s154 = sshll.u32 %s2, 4
          %s155 = int_to_ptr.vmem [resolvable:$true] %s154
          %157 = dma.vmem_to_smem %s155, 16, [#allocation4], [#allocation5]
        $region20: #{hardtanh_bound_to_pot_net.1} parent=11 // pred_fallthru
          _
      $region12: #{hardtanh_bound_to_pot_net.1} parent=5 // pred_fallthru
        _
      %p158 = scmp.lt.s32.totalorder %s11, 2
      // Predicated region
      $region21: #{hardtanh_bound_to_pot_net.1} parent=5 // pred_check
        %p159 = pneg %p158
      $region22: #{hardtanh_bound_to_pot_net.1} parent=5 // pred_check_branch
        %161 = sbr.rel (%p159) target = $region24
      $region23: #{hardtanh_bound_to_pot_net.1} parent=5 // pred_region
        // Predicated region
        $region25: #{hardtanh_bound_to_pot_net.1} parent=23 // pred_check
          %p162 = pneg %p45
        $region26: #{hardtanh_bound_to_pot_net.1} parent=23 // pred_check_branch
          %164 = sbr.rel (%p162) target = $region28
        $region27: #{hardtanh_bound_to_pot_net.1} parent=23 // pred_region
          %p165 = scmp.lt.s32.totalorder %s18, 1
          %s166 = scalar_select %p165, %s18, 1
          %p167 = scmp.lt.s32.totalorder %s19, 0
          %s168 = scalar_select %p167, %s19, 0
          %s169 = smul.addr %s166, 3
          %s170 = sadd.s32 %s168, %s169
          %s171 = smul.addr %s170, 8
          %s172 = scalar_lea.vmem %s0, %s171
        $region28: #{hardtanh_bound_to_pot_net.1} parent=23 // pred_fallthru
          _
      $region24: #{hardtanh_bound_to_pot_net.1} parent=5 // pred_fallthru
        _
      %p173 = scmp.le.s32.totalorder 1, %s11
      %p174 = scmp.lt.s32.totalorder %s11, 3
      %p175 = pnand %p173, %p174
      %p176 = pneg %p175
      // Predicated region
      $region29: #{hardtanh_bound_to_pot_net.1} parent=5 // pred_check
        _
      $region30: #{hardtanh_bound_to_pot_net.1} parent=5 // pred_check_branch
        %178 = sbr.rel (%p175) target = $region32
      $region31: #{hardtanh_bound_to_pot_net.1} parent=5 // pred_region
        %s179 = ssub.s32 %s11, 1
        // Predicated region
        $region33: #{hardtanh_bound_to_pot_net.1} parent=31 // pred_check
          %p180 = pneg %p72
        $region34: #{hardtanh_bound_to_pot_net.1} parent=31 // pred_check_branch
          %182 = sbr.rel (%p180) target = $region36
        $region35: #{hardtanh_bound_to_pot_net.1} parent=31 // pred_region
          %183 = dma.done [#allocation3], 16
        $region36: #{hardtanh_bound_to_pot_net.1} parent=31 // pred_fallthru
          _
        // Predicated region
        $region37: #{hardtanh_bound_to_pot_net.1} parent=31 // pred_check
          %p184 = pneg %p93
        $region38: #{hardtanh_bound_to_pot_net.1} parent=31 // pred_check_branch
          %186 = sbr.rel (%p184) target = $region40
        $region39: #{hardtanh_bound_to_pot_net.1} parent=31 // pred_region
          %187 = dma.done [#allocation5], 16
        $region40: #{hardtanh_bound_to_pot_net.1} parent=31 // pred_fallthru
          _
        %188 = sfence
        %p189 = scmp.lt.s32.totalorder %s20, 1
        %s190 = scalar_select %p189, %s20, 1
        %p191 = scmp.lt.s32.totalorder %s21, 0
        %s192 = scalar_select %p191, %s21, 0
        %s193 = smul.addr %s190, 3
        %s194 = sadd.s32 %s192, %s193
        %s195 = smul.addr %s194, 8
        %s196 = scalar_lea.vmem %s0, %s195
        %p197 = pneg %p51
        %p198 = pneg %p48
        %p199 = pneg %p72
        %p200 = pneg %p69
        %p201 = pneg %p93
        %p202 = pneg %p90
        %p203 = pneg %p121
        %p204 = pneg %p118
        %p205 = scmp.lt.s32.totalorder %s20, 1
        %s206 = scalar_select %p205, %s20, 1
        %p207 = scmp.lt.s32.totalorder %s21, 0
        %s208 = scalar_select %p207, %s21, 0
        %s209 = smul.addr %s206, 3
        %s210 = sadd.s32 %s208, %s209
        %s211 = smul.addr %s210, 8
        %s212 = scalar_lea.vmem %s3, %s211
        %p213 = scmp.lt.s32.totalorder %s20, 1
        %s214 = scalar_select %p213, %s20, 1
        %p215 = scmp.lt.s32.totalorder %s21, 0
        %s216 = scalar_select %p215, %s21, 0
        %s217 = smul.addr %s214, 3
        %s218 = sadd.s32 %s216, %s217
        %s219 = smul.addr %s218, 8
        %s220 = scalar_lea.vmem %s0, %s219
        %p221 = scmp.lt.s32.totalorder %s20, 1
        %s222 = scalar_select %p221, %s20, 1
        %p223 = scmp.lt.s32.totalorder %s21, 0
        %s224 = scalar_select %p223, %s21, 0
        %s225 = smul.addr %s222, 3
        %s226 = sadd.s32 %s224, %s225
        %s227 = smul.addr %s226, 8
        %s228 = scalar_lea.vmem %s3, %s227
        %v229 = vld [vmem:[%s220] sm:$0xff]
        %s230 = sadd.s32 0, 8
        %s231 = scalar_lea.vmem %s220, %s230
        %v232 = vld [vmem:[%s231] sm:$0xff]
        %s233 = sadd.s32 0, 16
        %s234 = scalar_lea.vmem %s220, %s233
        %v235 = vld [vmem:[%s234] sm:$0xff]
        %s236 = sld [smem:[#allocation2]]
        %v237 = vstv %s236
        %v238 = vmul.f32 %v237, %v229
        %s239 = sld [smem:[#allocation2 + $0x1]]
        %v240 = vstv %s239
        %v241 = vmul.f32 %v240, %v232
        %v242 = vadd.f32 %v238, %v241
        %s243 = sld [smem:[#allocation2 + $0x2]]
        %v244 = vstv %s243
        %v245 = vmul.f32 %v244, %v235
        %v246 = vadd.f32 %v242, %v245
        %s247 = sld [smem:[#allocation4]]
        %v248 = vstv %s247
        %v249 = vadd.f32 %v246, %v248
        %s250 = sld [smem:[#allocation2 + $0x3]]
        %v251 = vstv %s250
        %v252 = vmul.f32 %v251, %v229
        %s253 = sld [smem:[#allocation2 + $0x4]]
        %v254 = vstv %s253
        %v255 = vmul.f32 %v254, %v232
        %v256 = vadd.f32 %v252, %v255
        %s257 = sld [smem:[#allocation2 + $0x5]]
        %v258 = vstv %s257
        %v259 = vmul.f32 %v258, %v235
        %v260 = vadd.f32 %v256, %v259
        %s261 = sld [smem:[#allocation4 + $0x1]]
        %v262 = vstv %s261
        %v263 = vadd.f32 %v260, %v262
        %s264 = sld [smem:[#allocation2 + $0x6]]
        %v265 = vstv %s264
        %v266 = vmul.f32 %v265, %v229
        %s267 = sld [smem:[#allocation2 + $0x7]]
        %v268 = vstv %s267
        %v269 = vmul.f32 %v268, %v232
        %v270 = vadd.f32 %v266, %v269
        %s271 = sld [smem:[#allocation2 + $0x8]]
        %v272 = vstv %s271
        %v273 = vmul.f32 %v272, %v235
        %v274 = vadd.f32 %v270, %v273
        %s275 = sld [smem:[#allocation4 + $0x2]]
        %v276 = vstv %s275
        %v277 = vadd.f32 %v274, %v276
        %v278 = vmax.f32 %v249, 0.0
        %v279 = vmin.f32 %v278, 6.0
        %v280 = vmax.f32 %v263, 0.0
        %v281 = vmin.f32 %v280, 6.0
        %v282 = vmax.f32 %v277, 0.0
        %v283 = vmin.f32 %v282, 6.0
        %s284 = sld [smem:[#allocation2 + $0x9]]
        %v285 = vstv %s284
        %v286 = vmul.f32 %v285, %v279
        %s287 = sld [smem:[#allocation2 + $0xa]]
        %v288 = vstv %s287
        %v289 = vmul.f32 %v288, %v281
        %v290 = vadd.f32 %v286, %v289
        %s291 = sld [smem:[#allocation2 + $0xb]]
        %v292 = vstv %s291
        %v293 = vmul.f32 %v292, %v283
        %v294 = vadd.f32 %v290, %v293
        %s295 = sld [smem:[#allocation4 + $0x3]]
        %v296 = vstv %s295
        %v297 = vadd.f32 %v294, %v296
        %s298 = sld [smem:[#allocation2 + $0xc]]
        %v299 = vstv %s298
        %v300 = vmul.f32 %v299, %v279
        %s301 = sld [smem:[#allocation2 + $0xd]]
        %v302 = vstv %s301
        %v303 = vmul.f32 %v302, %v281
        %v304 = vadd.f32 %v300, %v303
        %s305 = sld [smem:[#allocation2 + $0xe]]
        %v306 = vstv %s305
        %v307 = vmul.f32 %v306, %v283
        %v308 = vadd.f32 %v304, %v307
        %s309 = sld [smem:[#allocation4 + $0x4]]
        %v310 = vstv %s309
        %v311 = vadd.f32 %v308, %v310
        %s312 = sld [smem:[#allocation2 + $0xf]]
        %v313 = vstv %s312
        %v314 = vmul.f32 %v313, %v279
        %s315 = sld [smem:[#allocation2 + $0x10]]
        %v316 = vstv %s315
        %v317 = vmul.f32 %v316, %v281
        %v318 = vadd.f32 %v314, %v317
        %s319 = sld [smem:[#allocation2 + $0x11]]
        %v320 = vstv %s319
        %v321 = vmul.f32 %v320, %v283
        %v322 = vadd.f32 %v318, %v321
        %s323 = sld [smem:[#allocation4 + $0x5]]
        %v324 = vstv %s323
        %v325 = vadd.f32 %v322, %v324
        %v326 = vmax.f32 %v297, 0.0
        %v327 = vmax.f32 %v311, 0.0
        %v328 = vmax.f32 %v325, 0.0
        %s329 = sld [smem:[#allocation2 + $0x12]]
        %v330 = vstv %s329
        %v331 = vmul.f32 %v330, %v326
        %s332 = sld [smem:[#allocation2 + $0x13]]
        %v333 = vstv %s332
        %v334 = vmul.f32 %v333, %v327
        %v335 = vadd.f32 %v331, %v334
        %s336 = sld [smem:[#allocation2 + $0x14]]
        %v337 = vstv %s336
        %v338 = vmul.f32 %v337, %v328
        %v339 = vadd.f32 %v335, %v338
        %s340 = sld [smem:[#allocation4 + $0x6]]
        %v341 = vstv %s340
        %v342 = vadd.f32 %v339, %v341
        %s343 = sld [smem:[#allocation2 + $0x15]]
        %v344 = vstv %s343
        %v345 = vmul.f32 %v344, %v326
        %s346 = sld [smem:[#allocation2 + $0x16]]
        %v347 = vstv %s346
        %v348 = vmul.f32 %v347, %v327
        %v349 = vadd.f32 %v345, %v348
        %s350 = sld [smem:[#allocation2 + $0x17]]
        %v351 = vstv %s350
        %v352 = vmul.f32 %v351, %v328
        %v353 = vadd.f32 %v349, %v352
        %s354 = sld [smem:[#allocation4 + $0x7]]
        %v355 = vstv %s354
        %v356 = vadd.f32 %v353, %v355
        %s357 = sld [smem:[#allocation2 + $0x18]]
        %v358 = vstv %s357
        %v359 = vmul.f32 %v358, %v326
        %s360 = sld [smem:[#allocation2 + $0x19]]
        %v361 = vstv %s360
        %v362 = vmul.f32 %v361, %v327
        %v363 = vadd.f32 %v359, %v362
        %s364 = sld [smem:[#allocation2 + $0x1a]]
        %v365 = vstv %s364
        %v366 = vmul.f32 %v365, %v328
        %v367 = vadd.f32 %v363, %v366
        %s368 = sld [smem:[#allocation4 + $0x8]]
        %v369 = vstv %s368
        %v370 = vadd.f32 %v367, %v369
        %v371 = vmax.f32 %v342, -2.0
        %v372 = vmin.f32 %v371, 6.0
        %v373 = vmax.f32 %v356, -2.0
        %v374 = vmin.f32 %v373, 6.0
        %v375 = vmax.f32 %v370, -2.0
        %v376 = vmin.f32 %v375, 6.0
        %s377 = sld [smem:[#allocation2 + $0x1b]]
        %v378 = vstv %s377
        %v379 = vmul.f32 %v378, %v372
        %s380 = sld [smem:[#allocation2 + $0x1c]]
        %v381 = vstv %s380
        %v382 = vmul.f32 %v381, %v374
        %v383 = vadd.f32 %v379, %v382
        %s384 = sld [smem:[#allocation2 + $0x1d]]
        %v385 = vstv %s384
        %v386 = vmul.f32 %v385, %v376
        %v387 = vadd.f32 %v383, %v386
        %s388 = sld [smem:[#allocation4 + $0x9]]
        %v389 = vstv %s388
        %v390 = vadd.f32 %v387, %v389
        %s391 = sld [smem:[#allocation2 + $0x1e]]
        %v392 = vstv %s391
        %v393 = vmul.f32 %v392, %v372
        %s394 = sld [smem:[#allocation2 + $0x1f]]
        %v395 = vstv %s394
        %v396 = vmul.f32 %v395, %v374
        %v397 = vadd.f32 %v393, %v396
        %s398 = sld [smem:[#allocation2 + $0x20]]
        %v399 = vstv %s398
        %v400 = vmul.f32 %v399, %v376
        %v401 = vadd.f32 %v397, %v400
        %s402 = sld [smem:[#allocation4 + $0xa]]
        %v403 = vstv %s402
        %v404 = vadd.f32 %v401, %v403
        %s405 = sld [smem:[#allocation2 + $0x21]]
        %v406 = vstv %s405
        %v407 = vmul.f32 %v406, %v372
        %s408 = sld [smem:[#allocation2 + $0x22]]
        %v409 = vstv %s408
        %v410 = vmul.f32 %v409, %v374
        %v411 = vadd.f32 %v407, %v410
        %s412 = sld [smem:[#allocation2 + $0x23]]
        %v413 = vstv %s412
        %v414 = vmul.f32 %v413, %v376
        %v415 = vadd.f32 %v411, %v414
        %s416 = sld [smem:[#allocation4 + $0xb]]
        %v417 = vstv %s416
        %v418 = vadd.f32 %v415, %v417
        %v419 = vmax.f32 %v390, 0.0
        %v420 = vmax.f32 %v404, 0.0
        %v421 = vmax.f32 %v418, 0.0
        %s422 = sld [smem:[#allocation2 + $0x24]]
        %v423 = vstv %s422
        %v424 = vmul.f32 %v423, %v419
        %s425 = sld [smem:[#allocation2 + $0x25]]
        %v426 = vstv %s425
        %v427 = vmul.f32 %v426, %v420
        %v428 = vadd.f32 %v424, %v427
        %s429 = sld [smem:[#allocation2 + $0x26]]
        %v430 = vstv %s429
        %v431 = vmul.f32 %v430, %v421
        %v432 = vadd.f32 %v428, %v431
        %s433 = sld [smem:[#allocation4 + $0xc]]
        %v434 = vstv %s433
        %v435 = vadd.f32 %v432, %v434
        %s436 = sld [smem:[#allocation2 + $0x27]]
        %v437 = vstv %s436
        %v438 = vmul.f32 %v437, %v419
        %s439 = sld [smem:[#allocation2 + $0x28]]
        %v440 = vstv %s439
        %v441 = vmul.f32 %v440, %v420
        %v442 = vadd.f32 %v438, %v441
        %s443 = sld [smem:[#allocation2 + $0x29]]
        %v444 = vstv %s443
        %v445 = vmul.f32 %v444, %v421
        %v446 = vadd.f32 %v442, %v445
        %s447 = sld [smem:[#allocation4 + $0xd]]
        %v448 = vstv %s447
        %v449 = vadd.f32 %v446, %v448
        %s450 = sld [smem:[#allocation2 + $0x2a]]
        %v451 = vstv %s450
        %v452 = vmul.f32 %v451, %v419
        %s453 = sld [smem:[#allocation2 + $0x2b]]
        %v454 = vstv %s453
        %v455 = vmul.f32 %v454, %v420
        %v456 = vadd.f32 %v452, %v455
        %s457 = sld [smem:[#allocation2 + $0x2c]]
        %v458 = vstv %s457
        %v459 = vmul.f32 %v458, %v421
        %v460 = vadd.f32 %v456, %v459
        %s461 = sld [smem:[#allocation4 + $0xe]]
        %v462 = vstv %s461
        %v463 = vadd.f32 %v460, %v462
        %v464 = vmax.f32 %v435, 0.0
        %v465 = vmin.f32 %v464, 6.0
        %v466 = vmax.f32 %v449, 0.0
        %v467 = vmin.f32 %v466, 6.0
        %v468 = vmax.f32 %v463, 0.0
        %v469 = vmin.f32 %v468, 6.0
        %s470 = sld [smem:[#allocation2 + $0x2d]]
        %v471 = vstv %s470
        %v472 = vmul.f32 %v471, %v465
        %s473 = sld [smem:[#allocation2 + $0x2e]]
        %v474 = vstv %s473
        %v475 = vmul.f32 %v474, %v467
        %v476 = vadd.f32 %v472, %v475
        %s477 = sld [smem:[#allocation2 + $0x2f]]
        %v478 = vstv %s477
        %v479 = vmul.f32 %v478, %v469
        %v480 = vadd.f32 %v476, %v479
        %s481 = sld [smem:[#allocation4 + $0xf]]
        %v482 = vstv %s481
        %v483 = vadd.f32 %v480, %v482
        %s484 = sld [smem:[#allocation2 + $0x30]]
        %v485 = vstv %s484
        %v486 = vmul.f32 %v485, %v465
        %s487 = sld [smem:[#allocation2 + $0x31]]
        %v488 = vstv %s487
        %v489 = vmul.f32 %v488, %v467
        %v490 = vadd.f32 %v486, %v489
        %s491 = sld [smem:[#allocation2 + $0x32]]
        %v492 = vstv %s491
        %v493 = vmul.f32 %v492, %v469
        %v494 = vadd.f32 %v490, %v493
        %s495 = sld [smem:[#allocation4 + $0x10]]
        %v496 = vstv %s495
        %v497 = vadd.f32 %v494, %v496
        %s498 = sld [smem:[#allocation2 + $0x33]]
        %v499 = vstv %s498
        %v500 = vmul.f32 %v499, %v465
        %s501 = sld [smem:[#allocation2 + $0x34]]
        %v502 = vstv %s501
        %v503 = vmul.f32 %v502, %v467
        %v504 = vadd.f32 %v500, %v503
        %s505 = sld [smem:[#allocation2 + $0x35]]
        %v506 = vstv %s505
        %v507 = vmul.f32 %v506, %v469
        %v508 = vadd.f32 %v504, %v507
        %s509 = sld [smem:[#allocation4 + $0x11]]
        %v510 = vstv %s509
        %v511 = vadd.f32 %v508, %v510
        %v512 = vmax.f32 %v483, 0.0
        %v513 = vmax.f32 %v497, 0.0
        %v514 = vmax.f32 %v511, 0.0
        %s515 = sld [smem:[#allocation2 + $0x36]]
        %v516 = vstv %s515
        %v517 = vmul.f32 %v516, %v512
        %s518 = sld [smem:[#allocation2 + $0x37]]
        %v519 = vstv %s518
        %v520 = vmul.f32 %v519, %v513
        %v521 = vadd.f32 %v517, %v520
        %s522 = sld [smem:[#allocation2 + $0x38]]
        %v523 = vstv %s522
        %v524 = vmul.f32 %v523, %v514
        %v525 = vadd.f32 %v521, %v524
        %s526 = sld [smem:[#allocation4 + $0x12]]
        %v527 = vstv %s526
        %v528 = vadd.f32 %v525, %v527
        %s529 = sld [smem:[#allocation2 + $0x39]]
        %v530 = vstv %s529
        %v531 = vmul.f32 %v530, %v512
        %s532 = sld [smem:[#allocation2 + $0x3a]]
        %v533 = vstv %s532
        %v534 = vmul.f32 %v533, %v513
        %v535 = vadd.f32 %v531, %v534
        %s536 = sld [smem:[#allocation2 + $0x3b]]
        %v537 = vstv %s536
        %v538 = vmul.f32 %v537, %v514
        %v539 = vadd.f32 %v535, %v538
        %s540 = sld [smem:[#allocation4 + $0x13]]
        %v541 = vstv %s540
        %v542 = vadd.f32 %v539, %v541
        %s543 = sld [smem:[#allocation2 + $0x3c]]
        %v544 = vstv %s543
        %v545 = vmul.f32 %v544, %v512
        %s546 = sld [smem:[#allocation2 + $0x3d]]
        %v547 = vstv %s546
        %v548 = vmul.f32 %v547, %v513
        %v549 = vadd.f32 %v545, %v548
        %s550 = sld [smem:[#allocation2 + $0x3e]]
        %v551 = vstv %s550
        %v552 = vmul.f32 %v551, %v514
        %v553 = vadd.f32 %v549, %v552
        %s554 = sld [smem:[#allocation4 + $0x14]]
        %v555 = vstv %s554
        %v556 = vadd.f32 %v553, %v555
        %v557 = vmax.f32 %v528, 0.0
        %v558 = vmin.f32 %v557, 4.0
        %v559 = vmax.f32 %v542, 0.0
        %v560 = vmin.f32 %v559, 4.0
        %v561 = vmax.f32 %v556, 0.0
        %v562 = vmin.f32 %v561, 4.0
        %s563 = sld [smem:[#allocation2 + $0x3f]]
        %v564 = vstv %s563
        %v565 = vmul.f32 %v564, %v558
        %s566 = sld [smem:[#allocation2 + $0x40]]
        %v567 = vstv %s566
        %v568 = vmul.f32 %v567, %v560
        %v569 = vadd.f32 %v565, %v568
        %s570 = sld [smem:[#allocation2 + $0x41]]
        %v571 = vstv %s570
        %v572 = vmul.f32 %v571, %v562
        %v573 = vadd.f32 %v569, %v572
        %s574 = sld [smem:[#allocation4 + $0x15]]
        %v575 = vstv %s574
        %v576 = vadd.f32 %v573, %v575
        %s577 = sld [smem:[#allocation2 + $0x42]]
        %v578 = vstv %s577
        %v579 = vmul.f32 %v578, %v558
        %s580 = sld [smem:[#allocation2 + $0x43]]
        %v581 = vstv %s580
        %v582 = vmul.f32 %v581, %v560
        %v583 = vadd.f32 %v579, %v582
        %s584 = sld [smem:[#allocation2 + $0x44]]
        %v585 = vstv %s584
        %v586 = vmul.f32 %v585, %v562
        %v587 = vadd.f32 %v583, %v586
        %s588 = sld [smem:[#allocation4 + $0x16]]
        %v589 = vstv %s588
        %v590 = vadd.f32 %v587, %v589
        %s591 = sld [smem:[#allocation2 + $0x45]]
        %v592 = vstv %s591
        %v593 = vmul.f32 %v592, %v558
        %s594 = sld [smem:[#allocation2 + $0x46]]
        %v595 = vstv %s594
        %v596 = vmul.f32 %v595, %v560
        %v597 = vadd.f32 %v593, %v596
        %s598 = sld [smem:[#allocation2 + $0x47]]
        %v599 = vstv %s598
        %v600 = vmul.f32 %v599, %v562
        %v601 = vadd.f32 %v597, %v600
        %s602 = sld [smem:[#allocation4 + $0x17]]
        %v603 = vstv %s602
        %v604 = vadd.f32 %v601, %v603
        %s605 = sld [smem:[#allocation2 + $0x48]]
        %v606 = vstv %s605
        %v607 = vmul.f32 %v606, %v576
        %s608 = sld [smem:[#allocation2 + $0x49]]
        %v609 = vstv %s608
        %v610 = vmul.f32 %v609, %v590
        %v611 = vadd.f32 %v607, %v610
        %s612 = sld [smem:[#allocation2 + $0x4a]]
        %v613 = vstv %s612
        %v614 = vmul.f32 %v613, %v604
        %v615 = vadd.f32 %v611, %v614
        %s616 = sld [smem:[#allocation4 + $0x18]]
        %v617 = vstv %s616
        %v618 = vadd.f32 %v615, %v617
        %s619 = sld [smem:[#allocation2 + $0x4b]]
        %v620 = vstv %s619
        %v621 = vmul.f32 %v620, %v576
        %s622 = sld [smem:[#allocation2 + $0x4c]]
        %v623 = vstv %s622
        %v624 = vmul.f32 %v623, %v590
        %v625 = vadd.f32 %v621, %v624
        %s626 = sld [smem:[#allocation2 + $0x4d]]
        %v627 = vstv %s626
        %v628 = vmul.f32 %v627, %v604
        %v629 = vadd.f32 %v625, %v628
        %s630 = sld [smem:[#allocation4 + $0x19]]
        %v631 = vstv %s630
        %v632 = vadd.f32 %v629, %v631
        %s633 = sld [smem:[#allocation2 + $0x4e]]
        %v634 = vstv %s633
        %v635 = vmul.f32 %v634, %v576
        %s636 = sld [smem:[#allocation2 + $0x4f]]
        %v637 = vstv %s636
        %v638 = vmul.f32 %v637, %v590
        %v639 = vadd.f32 %v635, %v638
        %s640 = sld [smem:[#allocation2 + $0x50]]
        %v641 = vstv %s640
        %v642 = vmul.f32 %v641, %v604
        %v643 = vadd.f32 %v639, %v642
        %s644 = sld [smem:[#allocation4 + $0x1a]]
        %v645 = vstv %s644
        %v646 = vadd.f32 %v643, %v645
        %v647 = vmax.f32 %v618, 0.0
        %v648 = vmax.f32 %v632, 0.0
        %v649 = vmax.f32 %v646, 0.0
        %650 = vst [vmem:[%s228] sm:$0xff] %v647
        %s651 = scalar_lea.vmem %s228, %s230
        %652 = vst [vmem:[%s651] sm:$0xff] %v648
        %s653 = scalar_lea.vmem %s228, %s233
        %654 = vst [vmem:[%s653] sm:$0xff] %v649
        %p655 = scmp.lt.s32.totalorder %s20, 1
        %s656 = scalar_select %p655, %s20, 1
        %p657 = scmp.lt.s32.totalorder %s21, 0
        %s658 = scalar_select %p657, %s21, 0
        %s659 = smul.addr %s656, 3
        %s660 = sadd.s32 %s658, %s659
        %s661 = smul.addr %s660, 8
        %s662 = scalar_lea.vmem %s3, %s661
        // Predicated region
        $region41: #{hardtanh_bound_to_pot_net.1} parent=31 // pred_check
          %p663 = pneg %p118
        $region42: #{hardtanh_bound_to_pot_net.1} parent=31 // pred_check_branch
          %665 = sbr.rel (%p663) target = $region44
        $region43: #{hardtanh_bound_to_pot_net.1} parent=31 // pred_region
          _
        $region44: #{hardtanh_bound_to_pot_net.1} parent=31 // pred_fallthru
          _
      $region32: #{hardtanh_bound_to_pot_net.1} parent=5 // pred_fallthru
        _
      %p666 = scmp.le.s32.totalorder 2, %s11
      // Predicated region
      $region45: #{hardtanh_bound_to_pot_net.1} parent=5 // pred_check
        %p667 = pneg %p666
      $region46: #{hardtanh_bound_to_pot_net.1} parent=5 // pred_check_branch
        %669 = sbr.rel (%p667) target = $region48
      $region47: #{hardtanh_bound_to_pot_net.1} parent=5 // pred_region
        %s670 = ssub.s32 %s11, 2
        // Predicated region
        $region49: #{hardtanh_bound_to_pot_net.1} parent=47 // pred_check
          %p671 = pneg %p124
        $region50: #{hardtanh_bound_to_pot_net.1} parent=47 // pred_check_branch
          %673 = sbr.rel (%p671) target = $region52
        $region51: #{hardtanh_bound_to_pot_net.1} parent=47 // pred_region
          %p674 = scmp.lt.s32.totalorder %s22, 1
          %s675 = scalar_select %p674, %s22, 1
          %p676 = scmp.lt.s32.totalorder %s23, 0
          %s677 = scalar_select %p676, %s23, 0
          %s678 = smul.addr %s675, 3
          %s679 = sadd.s32 %s677, %s678
          %s680 = smul.addr %s679, 8
          %s681 = scalar_lea.vmem %s3, %s680
        $region52: #{hardtanh_bound_to_pot_net.1} parent=47 // pred_fallthru
          _
      $region48: #{hardtanh_bound_to_pot_net.1} parent=5 // pred_fallthru
        _
    $region6: #{hardtanh_bound_to_pot_net.1} parent=1 // loop_footer
      %s15 = sadd.s32 1, %s11
    $region7: #{hardtanh_bound_to_pot_net.1} parent=1 // loop_footer_branch
      %10 = sbr.rel target = $region3
    $region8: #{hardtanh_bound_to_pot_net.1} parent=1 // loop_exit
      _
    %682 = vsyncpa [#allocation3], 1
    %s683 = scalar_lea.sflag [#allocation3], 1
    %684 = vsyncpa %s683, 1
    %685 = vsyncpa [#allocation5], 1

</llo_original>
